<compile_context>
chip_gen: v6e
topology: v6e:2x2x1
jax: 0.10.0
libtpu: 0.0.40
codegen_flags: <defaults>
</compile_context>

<pallas_src>
import jax
import jax.numpy as jnp
from jax.experimental import pallas as pl
from jax.experimental.pallas import tpu as pltpu


def _round_up(x, m):
    return ((x + m - 1) // m) * m


def _fbn_row_param_kernel(p_ref, x_ref, o_ref):
    # x: (tr, tc) tile of the (N*C, H*W) view.
    # p: (tr, 2) f32, p[:, 0] = scale, p[:, 1] = shift (one value per row,
    # i.e. per channel); broadcast across the lane (H*W) axis.
    x = x_ref[...].astype(jnp.float32)
    scale = p_ref[:, 0:1]
    shift = p_ref[:, 1:2]
    o_ref[...] = (x * scale + shift).astype(o_ref.dtype)


def _fbn_lane_param_kernel(p_ref, x_ref, o_ref):
    # x: (N, tc) tile of the (N, C*H*W) view.
    # p: (2, tc) f32, p[0] = per-lane scale, p[1] = per-lane shift (the
    # per-channel value repeated H*W times along the lane axis); broadcast
    # across the (small) batch/sublane axis.
    x = x_ref[...].astype(jnp.float32)
    scale = p_ref[0:1, :]
    shift = p_ref[1:2, :]
    o_ref[...] = (x * scale + shift).astype(o_ref.dtype)


def frozen_batch_norm_2d(x, weight, bias, running_mean, running_var, *,
                         eps=0.0,
                         target_block_bytes=4 * 1024 * 1024,
                         max_row_block=1024,
                         donate_input=False):
    """FrozenBatchNorm2d forward. x: (N, C, H, W) -> (N, C, H, W)."""
    if x.ndim != 4:
        raise ValueError('expected 4D input (got {}D input)'.format(x.ndim))
    n, c, h, w = x.shape
    hw = h * w
    elems = n * c * hw
    itemsize = jnp.dtype(x.dtype).itemsize
    # Sublane packing multiple for the activation dtype (f32/bf16/int8).
    sub = {1: 32, 2: 16, 4: 8}.get(itemsize, 8)

    vmem_limit = 48 * 1024 * 1024  # headroom over the 32 MiB scoped default,
    #                                still <= v7x's 64 MiB physical per-TC.

    # Per-channel affine params, computed once in f32 (C floats, negligible).
    # eps defaults to 0.0 to match the DexVLA module exactly.
    scale = weight.astype(jnp.float32) * jax.lax.rsqrt(
        running_var.astype(jnp.float32) + jnp.float32(eps))
    shift = bias.astype(jnp.float32) - running_mean.astype(jnp.float32) * scale

    # ------------------------------------------------------------------
    # Static layout choice.
    #   lane_pad_waste : fraction of every store/vreg wasted by a non-128-
    #                    multiple H*W lane width in the (N*C, H*W) view.
    #   lane_param_cost: extra HBM bytes (building + streaming the
    #                    (2, C*H*W) f32 table) per byte of x traffic in the
    #                    (N, C*H*W) view.
    # Use the lane-dense view only when it is a net win.
    # ------------------------------------------------------------------
    lane_pad_waste = (_round_up(hw, 128) - hw) / float(hw)
    lane_param_cost = 8.0 / (n * itemsize)
    use_lane_params = (hw % 128 != 0) and (lane_param_cost < lane_pad_waste)

    cost = pl.CostEstimate(flops=2 * elems, transcendentals=0,
                           bytes_accessed=2 * elems * itemsize + 8 * n * c)

    if use_lane_params:
        # ---------------- lane-param path: (N, C*H*W) ----------------
        chw = c * hw
        x2 = x.reshape(n, chw)                       # contiguous view, free.
        # (2, C*H*W) f32: row 0 = scale per lane, row 1 = shift per lane.
        params = jnp.stack(
            [jnp.repeat(scale, hw), jnp.repeat(shift, hw)], axis=0)

        pad_rows = _round_up(n, sub)                 # VMEM sublane padding.
        # Double-buffered x-in + x-out (padded rows) + 8-row-padded f32 params
        # per lane of tile width.
        bytes_per_lane = 2 * (2 * pad_rows * itemsize + 8 * 4)
        tc = max(128, (4 * target_block_bytes // bytes_per_lane) // 128 * 128)
        # Keep >=2 column blocks when possible (v7x dual-TC sharding).
        tc = min(tc, max(128, _round_up(pl.cdiv(chw, 2), 128)))
        if tc >= chw:
            tc = chw                                  # full extent is legal.
        grid = (pl.cdiv(chw, tc),)

        param_spec = pl.BlockSpec((2, tc), lambda j: (0, j))
        tile_spec = pl.BlockSpec((n, tc), lambda j: (0, j))

        extra = {'input_output_aliases': {1: 0}} if donate_input else {}
        out2 = pl.pallas_call(
            _fbn_lane_param_kernel,
            out_shape=jax.ShapeDtypeStruct((n, chw), x.dtype),
            grid_spec=pltpu.PrefetchScalarGridSpec(
                num_scalar_prefetch=0,
                grid=grid,
                in_specs=[param_spec, tile_spec],
                out_specs=tile_spec,
            ),
            compiler_params=pltpu.CompilerParams(
                dimension_semantics=("parallel",),
                vmem_limit_bytes=vmem_limit),
            cost_estimate=cost,
            **extra,
        )(params, x2)
        return out2.reshape(n, c, h, w)

    # ---------------- row-param path: (N*C, H*W) ----------------
    rows = n * c
    x2 = x.reshape(rows, hw)                          # contiguous view, free.
    # Single packed (rows, 2) f32 param array: [:, 0] = scale, [:, 1] = shift.
    params = jnp.stack([jnp.tile(scale, n), jnp.tile(shift, n)], axis=-1)

    # Column tile: prefer the full H*W (a (tr, hw) block of this row-major
    # view is one contiguous HBM region); only split columns (to a multiple
    # of 128) if even `sub` rows would exceed the byte budget.
    tc = hw
    tc_pad = _round_up(tc, 128)
    if tc_pad * itemsize * sub > target_block_bytes and hw > 128:
        tc = max(128, (target_block_bytes // (sub * itemsize)) // 128 * 128)
        tc_pad = tc

    # Row tile: byte budget on lane-padded bytes, rounded to the dtype's
    # sublane packing multiple, capped (v7x VMEM / param lane-pad safety).
    tr = target_block_bytes // (tc_pad * itemsize)
    tr = max(sub, (tr // sub) * sub)
    tr = min(tr, max_row_block)
    if tr >= rows:
        if rows >= 2 * sub:
            # Keep >=2 row blocks so both v7x TensorCores get work.
            tr = _round_up(pl.cdiv(rows, 2), sub)
        else:
            tr = rows                                 # full extent is legal.

    grid = (pl.cdiv(rows, tr), pl.cdiv(hw, tc))
    param_spec = pl.BlockSpec((tr, 2), lambda i, j: (i, 0))
    tile_spec = pl.BlockSpec((tr, tc), lambda i, j: (i, j))

    extra = {'input_output_aliases': {1: 0}} if donate_input else {}
    out2 = pl.pallas_call(
        _fbn_row_param_kernel,
        out_shape=jax.ShapeDtypeStruct((rows, hw), x.dtype),
        grid_spec=pltpu.PrefetchScalarGridSpec(
            num_scalar_prefetch=0,
            grid=grid,
            in_specs=[param_spec, tile_spec],
            out_specs=tile_spec,
        ),
        compiler_params=pltpu.CompilerParams(
            dimension_semantics=("parallel", "parallel"),
            vmem_limit_bytes=vmem_limit),
        cost_estimate=cost,
        **extra,
    )(params, x2)
    return out2.reshape(n, c, h, w)


def _reference(x, weight, bias, running_mean, running_var):
    w32 = weight.astype(jnp.float32)
    rv32 = running_var.astype(jnp.float32)
    scale = w32 * jax.lax.rsqrt(rv32)
    b = bias.astype(jnp.float32) - running_mean.astype(jnp.float32) * scale
    y = (x.astype(jnp.float32) * scale.reshape(1, -1, 1, 1)
         + b.reshape(1, -1, 1, 1))
    return y.astype(x.dtype)


if __name__ == "__main__":
    key = jax.random.PRNGKey(0)
    kx, kw, kb, km, kv, kx2, kx3 = jax.random.split(key, 7)

    # --- Test 1: main small test (row-param path, H*W multiple of 128) ---
    N, C, H, W = 2, 4, 16, 16
    x = jax.random.normal(kx, (N, C, H, W), dtype=jnp.float32)
    weight = jax.random.normal(kw, (C,), dtype=jnp.float32)
    bias = jax.random.normal(kb, (C,), dtype=jnp.float32)
    running_mean = jax.random.normal(km, (C,), dtype=jnp.float32)
    running_var = jax.random.uniform(kv, (C,), dtype=jnp.float32,
                                     minval=0.5, maxval=2.0)

    out = frozen_batch_norm_2d(x, weight, bias, running_mean, running_var)
    out = jax.block_until_ready(out)
    ref = _reference(x, weight, bias, running_mean, running_var)
    assert out.shape == (N, C, H, W)
    assert jnp.allclose(out, ref, atol=1e-5, rtol=1e-5), "mismatch (test 1)"

    # --- Test 2: row-param path with ragged blocks in BOTH grid axes ---
    N2, C2, H2, W2 = 2, 10, 8, 20        # rows=20, hw=160
    x_r = jax.random.normal(kx2, (N2, C2, H2, W2), dtype=jnp.float32)
    w2 = jnp.ones((C2,), jnp.float32) * 1.5
    b2 = jnp.full((C2,), 0.25, jnp.float32)
    m2 = jnp.full((C2,), -0.5, jnp.float32)
    v2 = jnp.full((C2,), 2.0, jnp.float32)
    out_r = frozen_batch_norm_2d(x_r, w2, b2, m2, v2,
                                 target_block_bytes=4096)   # force tiny tiles
    out_r = jax.block_until_ready(out_r)
    ref_r = _reference(x_r, w2, b2, m2, v2)
    assert jnp.allclose(out_r, ref_r, atol=1e-5, rtol=1e-5), "mismatch (test 2)"

    # --- Test 3: lane-param path (small 7x7 feature map, bf16 activations) ---
    N3, C3, H3, W3 = 4, 8, 7, 7          # hw=49 -> lane-dense (N, C*H*W) view
    x_s = jax.random.normal(kx3, (N3, C3, H3, W3), dtype=jnp.bfloat16)
    w3 = jax.random.normal(kw, (C3,), dtype=jnp.float32) * 0.5 + 1.0
    b3 = jax.random.normal(kb, (C3,), dtype=jnp.float32) * 0.1
    m3 = jax.random.normal(km, (C3,), dtype=jnp.float32) * 0.2
    v3 = jax.random.uniform(kv, (C3,), dtype=jnp.float32,
                            minval=0.5, maxval=2.0)
    out_s = frozen_batch_norm_2d(x_s, w3, b3, m3, v3)
    out_s = jax.block_until_ready(out_s)
    ref_s = _reference(x_s, w3, b3, m3, v3)
    assert jnp.allclose(out_s.astype(jnp.float32), ref_s.astype(jnp.float32),
                        atol=1e-2, rtol=1e-2), "mismatch (test 3)"

    print("KERNEL_OK")
</pallas_src>

<mosaic_0001>
module attributes {stable_mosaic.version = 11 : i64} {
  func.func @_fbn_row_param_kernel(%arg0: i32, %arg1: i32, %arg2: memref<8x2xf32, #tpu.memory_space<vmem>>, %arg3: memref<8x256xf32, #tpu.memory_space<vmem>>, %arg4: memref<8x256xf32, #tpu.memory_space<vmem>>) attributes {dimension_semantics = [#tpu.dimension_semantics<parallel>, #tpu.dimension_semantics<parallel>], iteration_bounds = array<i64: 1, 1>, scalar_prefetch = 0 : i64, scratch_operands = 0 : i64, tpu.core_type = #tpu.core_type<tc>, window_params = [{transform_indices = @transform_0, window_bounds = array<i64: 8, 2>}, {transform_indices = @transform_1, window_bounds = array<i64: 8, 256>}, {transform_indices = @transform_2, window_bounds = array<i64: 8, 256>}]} {
    %c0 = arith.constant 0 : index
    %c0_0 = arith.constant 0 : index
    %0 = vector.load %arg3[%c0, %c0_0] : memref<8x256xf32, #tpu.memory_space<vmem>>, vector<8x256xf32>
    %c0_1 = arith.constant 0 : index
    %c0_2 = arith.constant 0 : index
    %1 = vector.load %arg2[%c0_1, %c0_2] : memref<8x2xf32, #tpu.memory_space<vmem>>, vector<8x1xf32>
    %c0_3 = arith.constant 0 : index
    %c1 = arith.constant 1 : index
    %2 = vector.load %arg2[%c0_3, %c1] : memref<8x2xf32, #tpu.memory_space<vmem>>, vector<8x1xf32>
    %3 = vector.broadcast %1 : vector<8x1xf32> to vector<8x256xf32>
    %4 = arith.mulf %0, %3 : vector<8x256xf32>
    %5 = vector.broadcast %2 : vector<8x1xf32> to vector<8x256xf32>
    %6 = arith.addf %4, %5 : vector<8x256xf32>
    %c0_4 = arith.constant 0 : index
    %c0_5 = arith.constant 0 : index
    %7 = vector.load %arg4[%c0_4, %c0_5] : memref<8x256xf32, #tpu.memory_space<vmem>>, vector<8x256xf32>
    tpu.vector_store %arg4[%c0_4, %c0_5], %6 {strides = array<i32>} : memref<8x256xf32, #tpu.memory_space<vmem>>, vector<8x256xf32>,
    return
  }
  func.func @transform_0(%arg0: i32, %arg1: i32) -> (i32, i32) {
    %c0_i32 = arith.constant 0 : i32
    %c0_i32_0 = arith.constant 0 : i32
    return %arg0, %c0_i32 : i32, i32
  }
  func.func @transform_1(%arg0: i32, %arg1: i32) -> (i32, i32) {
    %c0_i32 = arith.constant 0 : i32
    return %arg0, %arg1 : i32, i32
  }
  func.func @transform_2(%arg0: i32, %arg1: i32) -> (i32, i32) {
    %c0_i32 = arith.constant 0 : i32
    return %arg0, %arg1 : i32, i32
  }
}

</mosaic_0001>

<llo_original>
// kernel: tpu_custom_call.1
$region0: #{tpu_custom_call.1}
  #allocation0 [shape = 'u32[]', space=smem, size = 0x4, offset = 0x4, fixed_abs, tag = 'smem constant byte address 0x4 - core index']
  #allocation1 [shape = 'u32[144,128]{1,0:T(1,128)}', space=vmem, size = 0x12000, scoped, tag = 'internal scratch']
  %s0 = inlined_call_operand.vmem [shape: f32[8,2], index: 0, kind: input, shape index: {}]
  %s1 = inlined_call_operand.hbm [shape: f32[8,256], index: 1, kind: input, shape index: {}]
  %s2 = inlined_call_operand.hbm [shape: f32[8,256], index: 2, kind: output, shape index: {}]
  %s3 = sld [smem:[#allocation0]]
  $region22: #{tpu_custom_call.1} parent=0
    _
  %s5 = ssub.s32 1, %s3
  %s6 = scalar_select 0, %s5, %s3
  $region1: #{tpu_custom_call.1} parent=0
    #allocation2 [shape = 'u8[8192]{0}', space=vmem, size = 0x2000, scoped, tag = 'input window, operand 1, single buffered']
    #allocation3 [shape = 's32[1]{0}', space=sflag, size = 0x4, scoped, tag = 'scoped memory for tpu_custom_call.1']
    #allocation4 [shape = 's32[1]{0}', space=sflag, size = 0x4, scoped, tag = 'scoped memory for tpu_custom_call.1']
    #allocation5 [shape = 'u8[8192]{0}', space=vmem, size = 0x2000, scoped, tag = 'output window, operand 0, single buffered']
    %7 = vsyncpa [#allocation3], 0
    %8 = vsyncpa [#allocation4], 0
    // Predicated region
    $region2: #{tpu_custom_call.1} parent=1 // pred_check
      _
    $region3: #{tpu_custom_call.1} parent=1 // pred_check_branch
      %10 = sbr.rel (0) target = $region5
    $region4: #{tpu_custom_call.1} parent=1 // pred_region
      _
    $region5: #{tpu_custom_call.1} parent=1 // pred_fallthru
      _
    // Predicated region
    $region6: #{tpu_custom_call.1} parent=1 // pred_check
      _
    $region7: #{tpu_custom_call.1} parent=1 // pred_check_branch
      %12 = sbr.rel (0) target = $region9
    $region8: #{tpu_custom_call.1} parent=1 // pred_region
      %s14 = ssub.s32 256, 256
      %15 = vsyncadd [#allocation3], %s14
      %s17 = sshll.u32 [#allocation2], 4
      %s18 = int_to_ptr.vmem [resolvable:$true] %s17
      %20 = dma.hbm_to_vmem [thread:$0]  %s1, 256, %s18, [#allocation3]
    $region9: #{tpu_custom_call.1} parent=1 // pred_fallthru
      _
    // Predicated region
    $region10: #{tpu_custom_call.1} parent=1 // pred_check
      _
    $region11: #{tpu_custom_call.1} parent=1 // pred_check_branch
      %22 = sbr.rel (0) target = $region13
    $region12: #{tpu_custom_call.1} parent=1 // pred_region
      %23 = dma.done [#allocation3], 256
    $region13: #{tpu_custom_call.1} parent=1 // pred_fallthru
      _
    %v24 = vld [vmem:[#allocation2] sm:$0xff]
    %v25 = vld [vmem:[#allocation2 + $0x8] sm:$0xff]
    %v26 = vld [vmem:[%s0] sm:$0xff]
    %28 = vset.pattern.permute.xlu0 0
    %29 = vperm.xlu0 %28, %v26
    %v30 = vpop.permute.xlu0 %29
    %v32 = vmul.f32 %v24, %v30
    %v33 = vmul.f32 %v25, %v30
    %34 = vset.pattern.permute.xlu0 1
    %35 = vperm.xlu0 %34, %v26
    %v36 = vpop.permute.xlu0 %35
    %v38 = vadd.f32 %v32, %v36
    %v39 = vadd.f32 %v33, %v36
    %40 = vst [vmem:[#allocation5] sm:$0xff] %v38
    %41 = vst [vmem:[#allocation5 + $0x8] sm:$0xff] %v39
    // Predicated region
    $region14: #{tpu_custom_call.1} parent=1 // pred_check
      _
    $region15: #{tpu_custom_call.1} parent=1 // pred_check_branch
      %43 = sbr.rel (0) target = $region17
    $region16: #{tpu_custom_call.1} parent=1 // pred_region
      %s45 = ssub.s32 256, 256
      %46 = vsyncadd [#allocation4], %s45
      %s48 = sshll.u32 [#allocation5], 4
      %s49 = int_to_ptr.vmem [resolvable:$true] %s48
      %51 = dma.vmem_to_hbm [thread:$0]  %s49, 256, %s2, [#allocation4]
    $region17: #{tpu_custom_call.1} parent=1 // pred_fallthru
      _
    // Predicated region
    $region18: #{tpu_custom_call.1} parent=1 // pred_check
      _
    $region19: #{tpu_custom_call.1} parent=1 // pred_check_branch
      %53 = sbr.rel (0) target = $region21
    $region20: #{tpu_custom_call.1} parent=1 // pred_region
      %54 = dma.done [#allocation4], 256
    $region21: #{tpu_custom_call.1} parent=1 // pred_fallthru
      _
    %55 = vsyncpa [#allocation3], 1
    %56 = vsyncpa [#allocation4], 1

</llo_original>
